<compile_context>
chip_gen: v5e
topology: v5e:2x2
jax: 0.10.0
libtpu: 0.0.40
codegen_flags: <defaults>
</compile_context>

<pallas_src>
import functools

import jax
import jax.numpy as jnp
from jax.experimental import pallas as pl
from jax.experimental.pallas import tpu as pltpu

EPS = 1e-5
_LANE = 128
_SUBLANE = 8


def _round_up(a, b):
    return (a + b - 1) // b * b


def _cdiv(a, b):
    return (a + b - 1) // b


def _col_mask(d_pad, d_true):
    if d_pad == d_true:
        return None
    return (jax.lax.broadcasted_iota(jnp.int32, (1, d_pad), 1)
            < d_true).astype(jnp.float32)


def _layernorm(x, gamma, beta, mask, inv_d):
    """LayerNorm over the last dim, ignoring zero-padded lanes.

    x: (T, Dp) f32 with padded lanes zero; gamma/beta: (1, Dp), zero in the
    padding; mask: (1, Dp) f32 {0,1} or None when Dp == true D; inv_d = 1/D.
    """
    mean = jnp.sum(x, axis=-1, keepdims=True) * inv_d   # zero padding doesn't bias the sum
    diff = x - mean
    if mask is not None:
        diff = diff * mask                               # keep padded lanes out of the variance
    var = jnp.sum(diff * diff, axis=-1, keepdims=True) * inv_d
    inv = jax.lax.rsqrt(var + EPS)
    return diff * inv * gamma + beta


# ---------------------------------------------------------------------------
# Path A: weight resident in VMEM (fetched once, single-buffered).
# ---------------------------------------------------------------------------
def _prenorm_resident_kernel(x_ref, g1_ref, b1_ref, wT_ref, bias_ref,
                             g2_ref, b2_ref, o_ref, *, d_true, mm_dtype):
    d_pad = x_ref.shape[-1]
    mask = _col_mask(d_pad, d_true)
    inv_d = jnp.float32(1.0 / d_true)

    x = x_ref[...].astype(jnp.float32)
    xn = _layernorm(x, g1_ref[...], b1_ref[...], mask, inv_d)

    # fn: Linear(dim, dim)  y = xn @ W.T + b   (W.T pre-transposed / pre-cast)
    y = jnp.dot(xn.astype(mm_dtype), wT_ref[...],
                preferred_element_type=jnp.float32)
    y = y + bias_ref[...]

    out = _layernorm(y, g2_ref[...], b2_ref[...], mask, inv_d)
    o_ref[...] = out.astype(o_ref.dtype)


# ---------------------------------------------------------------------------
# Path B: weight stays in HBM; K-tiled matmul with manually double-buffered
# slab DMAs and an f32 VMEM accumulator (for large D / small-VMEM v7x).
# ---------------------------------------------------------------------------
def _prenorm_streamed_kernel(x_ref, g1_ref, b1_ref, wT_hbm, bias_ref,
                             g2_ref, b2_ref, o_ref,
                             xn_ref, acc_ref, wbuf, sem,
                             *, d_true, mm_dtype, n_k, tk):
    d_pad = x_ref.shape[-1]
    mask = _col_mask(d_pad, d_true)
    inv_d = jnp.float32(1.0 / d_true)

    def slab_copy(kk, slot):   # kk is a Python int -> static slice of the HBM ref
        return pltpu.make_async_copy(wT_hbm.at[pl.ds(kk * tk, tk), :],
                                     wbuf.at[slot], sem.at[slot])

    slab_copy(0, 0).start()                      # overlap first slab DMA with LN

    x = x_ref[...].astype(jnp.float32)
    xn_ref[...] = _layernorm(x, g1_ref[...], b1_ref[...], mask, inv_d
                             ).astype(mm_dtype)
    acc_ref[...] = jnp.zeros_like(acc_ref)

    for kk in range(n_k):                        # static unroll; tk divides d_pad
        slot = kk & 1
        slab_copy(kk, slot).wait()
        if kk + 1 < n_k:
            slab_copy(kk + 1, 1 - slot).start()
        acc_ref[...] += jnp.dot(xn_ref[:, kk * tk:(kk + 1) * tk], wbuf[slot],
                                preferred_element_type=jnp.float32)

    y = acc_ref[...] + bias_ref[...]
    out = _layernorm(y, g2_ref[...], b2_ref[...], mask, inv_d)
    o_ref[...] = out.astype(o_ref.dtype)


# ---------------------------------------------------------------------------
# Wrapper
# ---------------------------------------------------------------------------
def _vmem_policy():
    """(vmem_limit_bytes, own-buffer budget) derived from the actual chip."""
    try:
        cap = int(getattr(pltpu.get_tpu_info(), "vmem_capacity_bytes",
                          64 * 1024 * 1024))
    except Exception:
        cap = 64 * 1024 * 1024                   # conservative (v7x-sized) fallback
    limit = (cap * 3) // 4                       # leave headroom for compiler scratch
    budget = (limit * 3) // 4                    # what our own buffers may claim
    return limit, budget


def _pick_tk(d_pad, max_slab_bytes, mm_isz):
    """Largest multiple-of-128 divisor of d_pad whose double-buffered slab fits."""
    m = d_pad // _LANE
    best = _LANE
    for d in range(1, m + 1):
        if m % d == 0 and 2 * d * _LANE * d_pad * mm_isz <= max_slab_bytes:
            best = d * _LANE
    return best


def prenorm(x, gamma1, beta1, w, b, gamma2, beta2, *,
            mm_dtype=jnp.bfloat16, out_dtype=None,
            tile_bytes=2 * 1024 * 1024, force_stream=False):
    """PreNorm(dim, fn=Linear(dim,dim), sandwich=True).

    x: [B, S, D]; w: [D, D] (PyTorch Linear weight, out x in); b: [D].
    mm_dtype=float32 gives strict parity with PyTorch's f32 Linear.
    """
    B, S, D = x.shape
    rows = B * S
    out_dtype = x.dtype if out_dtype is None else jnp.dtype(out_dtype)
    d_pad = _round_up(max(D, _LANE), _LANE)      # lane-dense feature dim

    x_isz = jnp.dtype(x.dtype).itemsize
    out_isz = jnp.dtype(out_dtype).itemsize
    mm_isz = jnp.dtype(mm_dtype).itemsize

    # ---- host-side prep (reshape is free; pads only when D % 128 != 0) ----
    x2 = x.reshape(rows, D)
    if d_pad != D:
        x2 = jnp.pad(x2, ((0, 0), (0, d_pad - D)))

    wT = w.T
    if d_pad != D:
        wT = jnp.pad(wT, ((0, d_pad - D), (0, d_pad - D)))
    wT = wT.astype(mm_dtype)                     # cast once; MXU gets low-precision operands

    def vec(v):
        v = jnp.asarray(v, jnp.float32).reshape(1, D)
        if d_pad != D:
            v = jnp.pad(v, ((0, 0), (0, d_pad - D)))
        return v

    g1, b1, bias, g2, b2 = map(vec, (gamma1, beta1, b, gamma2, beta2))

    # ---- VMEM policy & tile selection ----
    vmem_limit, budget = _vmem_policy()
    weight_bytes = d_pad * d_pad * mm_isz
    per_row_res = d_pad * (2 * x_isz + 2 * out_isz + 3 * 4)   # 2-buf in/out + ~3 f32 temps
    check_rows = min(256, _round_up(rows, _SUBLANE))
    resident = (not force_stream) and (weight_bytes + check_rows * per_row_res <= budget)

    if resident:
        fixed, per_row = weight_bytes, per_row_res
        tr = _round_up(max(1, tile_bytes // (x_isz * d_pad)), _SUBLANE)
        tr = max(tr, 256)                        # amortize ~0.35us/step overhead at large D
    else:
        tk = _LANE if force_stream else _pick_tk(d_pad, budget // 4, mm_isz)
        n_k = d_pad // tk
        fixed = 2 * tk * d_pad * mm_isz          # double-buffered weight slabs
        per_row = d_pad * (2 * x_isz + 2 * out_isz + mm_isz + 4 + 2 * 4)
        tr = 1 << 30                             # weight re-streamed per row tile: go as big as fits

    cap = max(_SUBLANE, ((budget - fixed) // per_row) // _SUBLANE * _SUBLANE)
    tr = min(tr, cap, 4096)
    if rows <= _SUBLANE:
        tr = rows                                # single block == full dim (allowed)
    else:
        # keep >= 2 row blocks so the "parallel" axis can feed both v7x TensorCores
        tr = min(tr, _round_up(_cdiv(rows, 2), _SUBLANE))
        tr = max(_SUBLANE, tr // _SUBLANE * _SUBLANE)
    grid = (_cdiv(rows, tr),)                    # no row padding: last block may be partial

    row_spec = pl.BlockSpec((tr, d_pad), lambda i: (i, 0))
    # Grid-invariant operands: constant block index, single-buffered.
    vec_spec = pl.BlockSpec((1, d_pad), lambda i: (0, 0),
                            pipeline_mode=pl.Buffered(1))

    if resident:
        mat_spec = pl.BlockSpec((d_pad, d_pad), lambda i: (0, 0),
                                pipeline_mode=pl.Buffered(1))
        kernel = functools.partial(_prenorm_resident_kernel,
                                   d_true=D, mm_dtype=mm_dtype)
        scratch = []
    else:
        mat_spec = pl.BlockSpec(memory_space=pl.ANY)          # weight stays in HBM
        kernel = functools.partial(_prenorm_streamed_kernel,
                                   d_true=D, mm_dtype=mm_dtype, n_k=n_k, tk=tk)
        scratch = [pltpu.VMEM((tr, d_pad), mm_dtype),         # xn (normalized x)
                   pltpu.VMEM((tr, d_pad), jnp.float32),      # f32 accumulator
                   pltpu.VMEM((2, tk, d_pad), mm_dtype),      # weight slab double buffer
                   pltpu.SemaphoreType.DMA((2,))]

    out2 = pl.pallas_call(
        kernel,
        out_shape=jax.ShapeDtypeStruct((rows, d_pad), out_dtype),
        grid_spec=pltpu.PrefetchScalarGridSpec(
            num_scalar_prefetch=0,
            grid=grid,
            in_specs=[row_spec, vec_spec, vec_spec, mat_spec, vec_spec,
                      vec_spec, vec_spec],
            out_specs=row_spec,
            scratch_shapes=scratch,
        ),
        compiler_params=pltpu.CompilerParams(
            dimension_semantics=("parallel",),   # rows shard across v7x's 2 TensorCores
            vmem_limit_bytes=vmem_limit,
        ),
    )(x2, g1, b1, wT, bias, g2, b2)

    if d_pad != D:
        out2 = out2[:, :D]                       # only when D is not lane-aligned
    return out2.reshape(B, S, D)


def prenorm_ref(x, gamma1, beta1, w, b, gamma2, beta2):
    def ln(v, g, bb):
        m = jnp.mean(v, axis=-1, keepdims=True)
        va = jnp.mean(jnp.square(v - m), axis=-1, keepdims=True)
        return (v - m) * jax.lax.rsqrt(va + EPS) * g + bb
    xn = ln(x, gamma1, beta1)
    y = jnp.einsum("bsd,od->bso", xn, w) + b
    return ln(y, gamma2, beta2)


if __name__ == "__main__":
    def make_case(key, B, S, D):
        kx, kw, kb = jax.random.split(key, 3)
        x = jax.random.normal(kx, (B, S, D), jnp.float32)
        # LayerNorm params: PyTorch defaults (weight=1, bias=0)
        gamma1 = jnp.ones((D,), jnp.float32)
        beta1 = jnp.zeros((D,), jnp.float32)
        gamma2 = jnp.ones((D,), jnp.float32)
        beta2 = jnp.zeros((D,), jnp.float32)
        # fn = Linear(dim, dim), deterministic init (~ Kaiming-uniform scale)
        bound = 1.0 / (D ** 0.5)
        w = jax.random.uniform(kw, (D, D), jnp.float32, -bound, bound)
        b = jax.random.uniform(kb, (D,), jnp.float32, -bound, bound)
        return (x, gamma1, beta1, w, b, gamma2, beta2)

    k0, k1 = jax.random.split(jax.random.PRNGKey(0))

    # Case 1: VMEM-resident weight path, bf16 MXU operands (production default).
    args = make_case(k0, 2, 8, 32)
    out = jax.block_until_ready(prenorm(*args))
    ref = prenorm_ref(*args)
    assert out.shape == args[0].shape
    assert bool(jnp.all(jnp.isfinite(out)))
    # bf16 MXU operands (f32 accumulation) loosen the tolerance vs. pure f32.
    assert jnp.allclose(out, ref, atol=5e-2, rtol=5e-2)

    # Case 2: same path with f32 MXU operands (closer parity with PyTorch f32).
    out32 = jax.block_until_ready(prenorm(*args, mm_dtype=jnp.float32))
    assert jnp.allclose(out32, ref, atol=5e-2, rtol=5e-2)

    # Case 3: HBM-resident (streamed) weight path — K-tiled matmul with manual
    # double-buffered slab DMAs — forced on a small case so it is exercised.
    args2 = make_case(k1, 2, 8, 256)
    outs = jax.block_until_ready(prenorm(*args2, force_stream=True))
    refs = prenorm_ref(*args2)
    assert outs.shape == args2[0].shape
    assert bool(jnp.all(jnp.isfinite(outs)))
    assert jnp.allclose(outs, refs, atol=5e-2, rtol=5e-2)

    print("KERNEL_OK")
</pallas_src>

<mosaic_0001>
module attributes {stable_mosaic.version = 11 : i64} {
  func.func @_prenorm_resident_kernel(%arg0: i32, %arg1: memref<8x128xf32, #tpu.memory_space<vmem>>, %arg2: memref<1x128xf32, #tpu.memory_space<vmem>>, %arg3: memref<1x128xf32, #tpu.memory_space<vmem>>, %arg4: memref<128x128xbf16, #tpu.memory_space<vmem>>, %arg5: memref<1x128xf32, #tpu.memory_space<vmem>>, %arg6: memref<1x128xf32, #tpu.memory_space<vmem>>, %arg7: memref<1x128xf32, #tpu.memory_space<vmem>>, %arg8: memref<8x128xf32, #tpu.memory_space<vmem>>) attributes {dimension_semantics = [#tpu.dimension_semantics<parallel>], iteration_bounds = array<i64: 2>, scalar_prefetch = 0 : i64, scratch_operands = 0 : i64, tpu.core_type = #tpu.core_type<tc>, window_params = [{transform_indices = @transform_0, window_bounds = array<i64: 8, 128>}, {pipeline_mode = #tpu.pipeline_mode<synchronous>, transform_indices = @transform_1, window_bounds = array<i64: 1, 128>}, {pipeline_mode = #tpu.pipeline_mode<synchronous>, transform_indices = @transform_2, window_bounds = array<i64: 1, 128>}, {pipeline_mode = #tpu.pipeline_mode<synchronous>, transform_indices = @transform_3, window_bounds = array<i64: 128, 128>}, {pipeline_mode = #tpu.pipeline_mode<synchronous>, transform_indices = @transform_4, window_bounds = array<i64: 1, 128>}, {pipeline_mode = #tpu.pipeline_mode<synchronous>, transform_indices = @transform_5, window_bounds = array<i64: 1, 128>}, {pipeline_mode = #tpu.pipeline_mode<synchronous>, transform_indices = @transform_6, window_bounds = array<i64: 1, 128>}, {transform_indices = @transform_7, window_bounds = array<i64: 8, 128>}]} {
    %0 = tpu.iota {dimensions = array<i32: 1>} : vector<1x128xi32>
    %c32_i32 = arith.constant 32 : i32
    %1 = vector.broadcast %c32_i32 : i32 to vector<1x128xi32>
    %2 = arith.cmpi slt, %0, %1 : vector<1x128xi32>
    %3 = arith.extui %2 : vector<1x128xi1> to vector<1x128xi32>
    %4 = arith.sitofp %3 : vector<1x128xi32> to vector<1x128xf32>
    %c0 = arith.constant 0 : index
    %c0_0 = arith.constant 0 : index
    %5 = vector.load %arg1[%c0, %c0_0] : memref<8x128xf32, #tpu.memory_space<vmem>>, vector<8x128xf32>
    %c0_1 = arith.constant 0 : index
    %c0_2 = arith.constant 0 : index
    %6 = vector.load %arg2[%c0_1, %c0_2] : memref<1x128xf32, #tpu.memory_space<vmem>>, vector<1x128xf32>
    %c0_3 = arith.constant 0 : index
    %c0_4 = arith.constant 0 : index
    %7 = vector.load %arg3[%c0_3, %c0_4] : memref<1x128xf32, #tpu.memory_space<vmem>>, vector<1x128xf32>
    %cst = arith.constant dense<0.000000e+00> : vector<8xf32>
    %8 = vector.multi_reduction <add>, %5, %cst [1] : vector<8x128xf32> to vector<8xf32>
    %9 = vector.shape_cast %8 : vector<8xf32> to vector<8x1xf32>
    %cst_5 = arith.constant 3.125000e-02 : f32
    %10 = vector.broadcast %cst_5 : f32 to vector<8x1xf32>
    %11 = arith.mulf %9, %10 : vector<8x1xf32>
    %12 = vector.broadcast %11 : vector<8x1xf32> to vector<8x128xf32>
    %13 = arith.subf %5, %12 : vector<8x128xf32>
    %14 = vector.broadcast %4 : vector<1x128xf32> to vector<8x128xf32>
    %15 = arith.mulf %13, %14 : vector<8x128xf32>
    %16 = arith.mulf %15, %15 : vector<8x128xf32>
    %cst_6 = arith.constant dense<0.000000e+00> : vector<8xf32>
    %17 = vector.multi_reduction <add>, %16, %cst_6 [1] : vector<8x128xf32> to vector<8xf32>
    %18 = vector.shape_cast %17 : vector<8xf32> to vector<8x1xf32>
    %cst_7 = arith.constant 3.125000e-02 : f32
    %19 = vector.broadcast %cst_7 : f32 to vector<8x1xf32>
    %20 = arith.mulf %18, %19 : vector<8x1xf32>
    %cst_8 = arith.constant 9.99999974E-6 : f32
    %21 = vector.broadcast %cst_8 : f32 to vector<8x1xf32>
    %22 = arith.addf %20, %21 : vector<8x1xf32>
    %23 = math.rsqrt %22 : vector<8x1xf32>
    %24 = vector.broadcast %23 : vector<8x1xf32> to vector<8x128xf32>
    %25 = arith.mulf %15, %24 : vector<8x128xf32>
    %26 = vector.broadcast %6 : vector<1x128xf32> to vector<8x128xf32>
    %27 = arith.mulf %25, %26 : vector<8x128xf32>
    %28 = vector.broadcast %7 : vector<1x128xf32> to vector<8x128xf32>
    %29 = arith.addf %27, %28 : vector<8x128xf32>
    %30 = arith.truncf %29 : vector<8x128xf32> to vector<8x128xbf16>
    %c0_9 = arith.constant 0 : index
    %c0_10 = arith.constant 0 : index
    %31 = vector.load %arg4[%c0_9, %c0_10] : memref<128x128xbf16, #tpu.memory_space<vmem>>, vector<128x128xbf16>
    %cst_11 = arith.constant dense<0.000000e+00> : vector<8x128xf32>
    %32 = tpu.matmul %30, %31, %cst_11 {dimension_numbers = #tpu.dot_dimension_numbers<[1], [0], [0], [1], [0, 0, 1, 1], [], []>} : vector<8x128xbf16>, vector<128x128xbf16>, vector<8x128xf32> -> vector<8x128xf32>
    %c0_12 = arith.constant 0 : index
    %c0_13 = arith.constant 0 : index
    %33 = vector.load %arg5[%c0_12, %c0_13] : memref<1x128xf32, #tpu.memory_space<vmem>>, vector<1x128xf32>
    %34 = vector.broadcast %33 : vector<1x128xf32> to vector<8x128xf32>
    %35 = arith.addf %32, %34 : vector<8x128xf32>
    %c0_14 = arith.constant 0 : index
    %c0_15 = arith.constant 0 : index
    %36 = vector.load %arg6[%c0_14, %c0_15] : memref<1x128xf32, #tpu.memory_space<vmem>>, vector<1x128xf32>
    %c0_16 = arith.constant 0 : index
    %c0_17 = arith.constant 0 : index
    %37 = vector.load %arg7[%c0_16, %c0_17] : memref<1x128xf32, #tpu.memory_space<vmem>>, vector<1x128xf32>
    %cst_18 = arith.constant dense<0.000000e+00> : vector<8xf32>
    %38 = vector.multi_reduction <add>, %35, %cst_18 [1] : vector<8x128xf32> to vector<8xf32>
    %39 = vector.shape_cast %38 : vector<8xf32> to vector<8x1xf32>
    %cst_19 = arith.constant 3.125000e-02 : f32
    %40 = vector.broadcast %cst_19 : f32 to vector<8x1xf32>
    %41 = arith.mulf %39, %40 : vector<8x1xf32>
    %42 = vector.broadcast %41 : vector<8x1xf32> to vector<8x128xf32>
    %43 = arith.subf %35, %42 : vector<8x128xf32>
    %44 = vector.broadcast %4 : vector<1x128xf32> to vector<8x128xf32>
    %45 = arith.mulf %43, %44 : vector<8x128xf32>
    %46 = arith.mulf %45, %45 : vector<8x128xf32>
    %cst_20 = arith.constant dense<0.000000e+00> : vector<8xf32>
    %47 = vector.multi_reduction <add>, %46, %cst_20 [1] : vector<8x128xf32> to vector<8xf32>
    %48 = vector.shape_cast %47 : vector<8xf32> to vector<8x1xf32>
    %cst_21 = arith.constant 3.125000e-02 : f32
    %49 = vector.broadcast %cst_21 : f32 to vector<8x1xf32>
    %50 = arith.mulf %48, %49 : vector<8x1xf32>
    %cst_22 = arith.constant 9.99999974E-6 : f32
    %51 = vector.broadcast %cst_22 : f32 to vector<8x1xf32>
    %52 = arith.addf %50, %51 : vector<8x1xf32>
    %53 = math.rsqrt %52 : vector<8x1xf32>
    %54 = vector.broadcast %53 : vector<8x1xf32> to vector<8x128xf32>
    %55 = arith.mulf %45, %54 : vector<8x128xf32>
    %56 = vector.broadcast %36 : vector<1x128xf32> to vector<8x128xf32>
    %57 = arith.mulf %55, %56 : vector<8x128xf32>
    %58 = vector.broadcast %37 : vector<1x128xf32> to vector<8x128xf32>
    %59 = arith.addf %57, %58 : vector<8x128xf32>
    %c0_23 = arith.constant 0 : index
    %c0_24 = arith.constant 0 : index
    %60 = vector.load %arg8[%c0_23, %c0_24] : memref<8x128xf32, #tpu.memory_space<vmem>>, vector<8x128xf32>
    tpu.vector_store %arg8[%c0_23, %c0_24], %59 {strides = array<i32>} : memref<8x128xf32, #tpu.memory_space<vmem>>, vector<8x128xf32>,
    return
  }
  func.func @transform_0(%arg0: i32) -> (i32, i32) {
    %c0_i32 = arith.constant 0 : i32
    %c0_i32_0 = arith.constant 0 : i32
    return %arg0, %c0_i32 : i32, i32
  }
  func.func @transform_1(%arg0: i32) -> (i32, i32) {
    %c0_i32 = arith.constant 0 : i32
    %c0_i32_0 = arith.constant 0 : i32
    %c0_i32_1 = arith.constant 0 : i32
    return %c0_i32, %c0_i32_0 : i32, i32
  }
  func.func @transform_2(%arg0: i32) -> (i32, i32) {
    %c0_i32 = arith.constant 0 : i32
    %c0_i32_0 = arith.constant 0 : i32
    %c0_i32_1 = arith.constant 0 : i32
    return %c0_i32, %c0_i32_0 : i32, i32
  }
  func.func @transform_3(%arg0: i32) -> (i32, i32) {
    %c0_i32 = arith.constant 0 : i32
    %c0_i32_0 = arith.constant 0 : i32
    %c0_i32_1 = arith.constant 0 : i32
    return %c0_i32, %c0_i32_0 : i32, i32
  }
  func.func @transform_4(%arg0: i32) -> (i32, i32) {
    %c0_i32 = arith.constant 0 : i32
    %c0_i32_0 = arith.constant 0 : i32
    %c0_i32_1 = arith.constant 0 : i32
    return %c0_i32, %c0_i32_0 : i32, i32
  }
  func.func @transform_5(%arg0: i32) -> (i32, i32) {
    %c0_i32 = arith.constant 0 : i32
    %c0_i32_0 = arith.constant 0 : i32
    %c0_i32_1 = arith.constant 0 : i32
    return %c0_i32, %c0_i32_0 : i32, i32
  }
  func.func @transform_6(%arg0: i32) -> (i32, i32) {
    %c0_i32 = arith.constant 0 : i32
    %c0_i32_0 = arith.constant 0 : i32
    %c0_i32_1 = arith.constant 0 : i32
    return %c0_i32, %c0_i32_0 : i32, i32
  }
  func.func @transform_7(%arg0: i32) -> (i32, i32) {
    %c0_i32 = arith.constant 0 : i32
    %c0_i32_0 = arith.constant 0 : i32
    return %arg0, %c0_i32 : i32, i32
  }
}

</mosaic_0001>

<llo_original>
// kernel: tpu_custom_call.1
$region0: #{tpu_custom_call.1}
  #allocation0 [shape = 'u32[]', space=smem, size = 0x4, offset = 0x4, fixed_abs, tag = 'smem constant byte address 0x4 - core index']
  #allocation1 [shape = 'u32[72,128]{1,0:T(1,128)}', space=vmem, size = 0x9000, scoped, tag = 'internal scratch']
  %s0 = inlined_call_operand.hbm [shape: f32[16,128], index: 0, kind: input, shape index: {}]
  %s1 = inlined_call_operand.hbm [shape: f32[1,128], index: 1, kind: input, shape index: {}]
  %s2 = inlined_call_operand.vmem [shape: f32[1,128], index: 2, kind: input, shape index: {}]
  %s3 = inlined_call_operand.hbm [shape: bf16[128,128], index: 3, kind: input, shape index: {}]
  %s4 = inlined_call_operand.vmem [shape: f32[1,128], index: 4, kind: input, shape index: {}]
  %s5 = inlined_call_operand.vmem [shape: f32[1,128], index: 5, kind: input, shape index: {}]
  %s6 = inlined_call_operand.vmem [shape: f32[1,128], index: 6, kind: input, shape index: {}]
  %s7 = inlined_call_operand.hbm [shape: f32[16,128], index: 7, kind: output, shape index: {}]
  %s8 = sld [smem:[#allocation0]]
  $region73: #{tpu_custom_call.1} parent=0
    _
  %s10 = ssub.s32 1, %s8
  %s11 = scalar_select 0, %s10, %s8
  $region1: #{tpu_custom_call.1} parent=0
    #allocation2 [shape = 'u8[8192]{0}', space=vmem, size = 0x2000, scoped, tag = 'input window, operand 0']
    #allocation3 [shape = 's32[2]{0}', space=sflag, size = 0x8, scoped, tag = 'scoped memory for tpu_custom_call.1']
    #allocation4 [shape = 's32[2]{0}', space=sflag, size = 0x8, scoped, tag = 'scoped memory for tpu_custom_call.1']
    #allocation5 [shape = 'u8[512]{0}', space=vmem, size = 0x400, scoped, tag = 'input window, operand 1, single buffered']
    #allocation6 [shape = 's32[1]{0}', space=sflag, size = 0x4, scoped, tag = 'scoped memory for tpu_custom_call.1']
    #allocation7 [shape = 'u8[32768]{0}', space=vmem, size = 0x8000, scoped, tag = 'input window, operand 3, single buffered']
    #allocation8 [shape = 'u8[8192]{0}', space=vmem, size = 0x2000, scoped, tag = 'output window, operand 0']
    %12 = vsyncpa [#allocation3], 0
    %s13 = scalar_lea.sflag [#allocation3], 1
    %14 = vsyncpa %s13, 0
    %15 = vsyncpa [#allocation6], 0
    %16 = vsyncpa [#allocation4], 0
    %s17 = scalar_lea.sflag [#allocation4], 1
    %18 = vsyncpa %s17, 0
    loop: start=0, step=1, limit=4
    $region2: #{tpu_custom_call.1} parent=1 // loop_pre_header
      _
    $region3: #{tpu_custom_call.1} parent=1 // loop_header
      %s20 = sphi 0, %s24
      %p21 = scmp.ge.s32.totalorder %s20, 4
      %s30 = sphi 0, %s32
      %s33 = sphi 0, %s30
      %s34 = sphi 0, %s33
      %s50 = sphi 0, %s34
      %s54 = sphi 0, %s54
      %s56 = sphi 0, %s54
      %s57 = sphi 0, %s56
      %s71 = sphi 0, %s57
      %s75 = sphi 0, %s75
      %s77 = sphi 0, %s75
      %s78 = sphi 0, %s77
      %s92 = sphi 0, %s78
      %s96 = sphi 0, %s96
      %s98 = sphi 0, %s96
      %s99 = sphi 0, %s98
      %s113 = sphi 0, %s99
      %s117 = sphi 0, %s117
      %s119 = sphi 0, %s117
      %s120 = sphi 0, %s119
      %s134 = sphi 0, %s120
      %s138 = sphi 0, %s138
      %s140 = sphi 0, %s138
      %s141 = sphi 0, %s140
      %s155 = sphi 0, %s141
      %s159 = sphi 0, %s159
      %s161 = sphi 0, %s159
      %s162 = sphi 0, %s161
      %s176 = sphi 0, %s162
      %s182 = sphi 0, %s184
      %s185 = sphi 0, %s182
      %s186 = sphi 0, %s185
      %s202 = sphi 0, %s186
    $region4: #{tpu_custom_call.1} parent=1 // loop_header_branch
      %23 = sbr.rel (%p21) target = $region8
    $region5: #{tpu_custom_call.1} parent=1 // loop_body
      %s25 = ssub.s32 %s20, 1
      %s26 = ssub.s32 %s20, 2
      %s27 = sadd.s32 %s20, 1
      %s28 = ssub.s32 %s20, %s27
      %p29 = scmp.eq.s32.totalorder %s28, 0
      %s31 = sadd.s32 %s30, 1
      %s32 = scalar_select %p29, %s30, %s31
      %p35 = pneg %p29
      %p36 = scmp.eq.s32.totalorder %s20, 1
      %p37 = por %p35, %p36
      %p38 = scmp.ne.s32.totalorder %s30, %s33
      %p39 = scmp.eq.s32.totalorder %s20, 0
      %p40 = por %p38, %p39
      %p41 = scmp.ne.s32.totalorder %s30, %s33
      %p42 = scmp.eq.s32.totalorder %s25, 1
      %p43 = por %p41, %p42
      %p44 = scmp.ne.s32.totalorder %s33, %s34
      %p45 = scmp.eq.s32.totalorder %s25, 0
      %p46 = por %p44, %p45
      %p47 = scmp.ne.s32.totalorder %s33, %s34
      %p48 = scmp.eq.s32.totalorder %s26, 1
      %p49 = por %p47, %p48
      %p51 = scmp.ne.s32.totalorder %s34, %s50
      %p52 = scmp.eq.s32.totalorder %s26, 0
      %p53 = por %p51, %p52
      %s55 = sadd.s32 %s54, 1
      %p58 = scmp.eq.s32.totalorder %s20, 1
      %p59 = scmp.ne.s32.totalorder %s54, %s56
      %p60 = scmp.eq.s32.totalorder %s20, 0
      %p61 = por %p59, %p60
      %p62 = scmp.ne.s32.totalorder %s54, %s56
      %p63 = scmp.eq.s32.totalorder %s25, 1
      %p64 = por %p62, %p63
      %p65 = scmp.ne.s32.totalorder %s56, %s57
      %p66 = scmp.eq.s32.totalorder %s25, 0
      %p67 = por %p65, %p66
      %p68 = scmp.ne.s32.totalorder %s56, %s57
      %p69 = scmp.eq.s32.totalorder %s26, 1
      %p70 = por %p68, %p69
      %p72 = scmp.ne.s32.totalorder %s57, %s71
      %p73 = scmp.eq.s32.totalorder %s26, 0
      %p74 = por %p72, %p73
      %s76 = sadd.s32 %s75, 1
      %p79 = scmp.eq.s32.totalorder %s20, 1
      %p80 = scmp.ne.s32.totalorder %s75, %s77
      %p81 = scmp.eq.s32.totalorder %s20, 0
      %p82 = por %p80, %p81
      %p83 = scmp.ne.s32.totalorder %s75, %s77
      %p84 = scmp.eq.s32.totalorder %s25, 1
      %p85 = por %p83, %p84
      %p86 = scmp.ne.s32.totalorder %s77, %s78
      %p87 = scmp.eq.s32.totalorder %s25, 0
      %p88 = por %p86, %p87
      %p89 = scmp.ne.s32.totalorder %s77, %s78
      %p90 = scmp.eq.s32.totalorder %s26, 1
      %p91 = por %p89, %p90
      %p93 = scmp.ne.s32.totalorder %s78, %s92
      %p94 = scmp.eq.s32.totalorder %s26, 0
      %p95 = por %p93, %p94
      %s97 = sadd.s32 %s96, 1
      %p100 = scmp.eq.s32.totalorder %s20, 1
      %p101 = scmp.ne.s32.totalorder %s96, %s98
      %p102 = scmp.eq.s32.totalorder %s20, 0
      %p103 = por %p101, %p102
      %p104 = scmp.ne.s32.totalorder %s96, %s98
      %p105 = scmp.eq.s32.totalorder %s25, 1
      %p106 = por %p104, %p105
      %p107 = scmp.ne.s32.totalorder %s98, %s99
      %p108 = scmp.eq.s32.totalorder %s25, 0
      %p109 = por %p107, %p108
      %p110 = scmp.ne.s32.totalorder %s98, %s99
      %p111 = scmp.eq.s32.totalorder %s26, 1
      %p112 = por %p110, %p111
      %p114 = scmp.ne.s32.totalorder %s99, %s113
      %p115 = scmp.eq.s32.totalorder %s26, 0
      %p116 = por %p114, %p115
      %s118 = sadd.s32 %s117, 1
      %p121 = scmp.eq.s32.totalorder %s20, 1
      %p122 = scmp.ne.s32.totalorder %s117, %s119
      %p123 = scmp.eq.s32.totalorder %s20, 0
      %p124 = por %p122, %p123
      %p125 = scmp.ne.s32.totalorder %s117, %s119
      %p126 = scmp.eq.s32.totalorder %s25, 1
      %p127 = por %p125, %p126
      %p128 = scmp.ne.s32.totalorder %s119, %s120
      %p129 = scmp.eq.s32.totalorder %s25, 0
      %p130 = por %p128, %p129
      %p131 = scmp.ne.s32.totalorder %s119, %s120
      %p132 = scmp.eq.s32.totalorder %s26, 1
      %p133 = por %p131, %p132
      %p135 = scmp.ne.s32.totalorder %s120, %s134
      %p136 = scmp.eq.s32.totalorder %s26, 0
      %p137 = por %p135, %p136
      %s139 = sadd.s32 %s138, 1
      %p142 = scmp.eq.s32.totalorder %s20, 1
      %p143 = scmp.ne.s32.totalorder %s138, %s140
      %p144 = scmp.eq.s32.totalorder %s20, 0
      %p145 = por %p143, %p144
      %p146 = scmp.ne.s32.totalorder %s138, %s140
      %p147 = scmp.eq.s32.totalorder %s25, 1
      %p148 = por %p146, %p147
      %p149 = scmp.ne.s32.totalorder %s140, %s141
      %p150 = scmp.eq.s32.totalorder %s25, 0
      %p151 = por %p149, %p150
      %p152 = scmp.ne.s32.totalorder %s140, %s141
      %p153 = scmp.eq.s32.totalorder %s26, 1
      %p154 = por %p152, %p153
      %p156 = scmp.ne.s32.totalorder %s141, %s155
      %p157 = scmp.eq.s32.totalorder %s26, 0
      %p158 = por %p156, %p157
      %s160 = sadd.s32 %s159, 1
      %p163 = scmp.eq.s32.totalorder %s20, 1
      %p164 = scmp.ne.s32.totalorder %s159, %s161
      %p165 = scmp.eq.s32.totalorder %s20, 0
      %p166 = por %p164, %p165
      %p167 = scmp.ne.s32.totalorder %s159, %s161
      %p168 = scmp.eq.s32.totalorder %s25, 1
      %p169 = por %p167, %p168
      %p170 = scmp.ne.s32.totalorder %s161, %s162
      %p171 = scmp.eq.s32.totalorder %s25, 0
      %p172 = por %p170, %p171
      %p173 = scmp.ne.s32.totalorder %s161, %s162
      %p174 = scmp.eq.s32.totalorder %s26, 1
      %p175 = por %p173, %p174
      %p177 = scmp.ne.s32.totalorder %s162, %s176
      %p178 = scmp.eq.s32.totalorder %s26, 0
      %p179 = por %p177, %p178
      %s180 = ssub.s32 %s20, %s27
      %p181 = scmp.eq.s32.totalorder %s180, 0
      %s183 = sadd.s32 %s182, 1
      %s184 = scalar_select %p181, %s182, %s183
      %p187 = pneg %p181
      %p188 = scmp.eq.s32.totalorder %s20, 1
      %p189 = por %p187, %p188
      %p190 = scmp.ne.s32.totalorder %s182, %s185
      %p191 = scmp.eq.s32.totalorder %s20, 0
      %p192 = por %p190, %p191
      %p193 = scmp.ne.s32.totalorder %s182, %s185
      %p194 = scmp.eq.s32.totalorder %s25, 1
      %p195 = por %p193, %p194
      %p196 = scmp.ne.s32.totalorder %s185, %s186
      %p197 = scmp.eq.s32.totalorder %s25, 0
      %p198 = por %p196, %p197
      %p199 = scmp.ne.s32.totalorder %s185, %s186
      %p200 = scmp.eq.s32.totalorder %s26, 1
      %p201 = por %p199, %p200
      %p203 = scmp.ne.s32.totalorder %s186, %s202
      %p204 = scmp.eq.s32.totalorder %s26, 0
      %p205 = por %p203, %p204
      %p206 = scmp.le.s32.totalorder 1, %s20
      %p207 = scmp.lt.s32.totalorder %s20, 3
      %p208 = pnand %p206, %p207
      %p209 = pneg %p208
      // Predicated region
      $region9: #{tpu_custom_call.1} parent=5 // pred_check
        _
      $region10: #{tpu_custom_call.1} parent=5 // pred_check_branch
        %211 = sbr.rel (%p208) target = $region12
      $region11: #{tpu_custom_call.1} parent=5 // pred_region
        %s212 = ssub.s32 %s20, 1
        // Predicated region
        $region13: #{tpu_custom_call.1} parent=11 // pred_check
          %p213 = pneg %p67
        $region14: #{tpu_custom_call.1} parent=11 // pred_check_branch
          %215 = sbr.rel (%p213) target = $region16
        $region15: #{tpu_custom_call.1} parent=11 // pred_region
          %217 = vsyncadd [#allocation6], 0
          %s219 = sshll.u32 %s1, 4
          %s220 = int_to_ptr.hbm [resolvable:$true] %s219
          %s221 = sshll.u32 [#allocation5], 4
          %s222 = int_to_ptr.vmem [resolvable:$true] %s221
          %224 = dma.hbm_to_vmem [thread:$0]  %s220, 16, %s222, [#allocation6]
        $region16: #{tpu_custom_call.1} parent=11 // pred_fallthru
          _
        // Predicated region
        $region17: #{tpu_custom_call.1} parent=11 // pred_check
          %p225 = pneg %p88
        $region18: #{tpu_custom_call.1} parent=11 // pred_check_branch
          %227 = sbr.rel (%p225) target = $region20
        $region19: #{tpu_custom_call.1} parent=11 // pred_region
          _
        $region20: #{tpu_custom_call.1} parent=11 // pred_fallthru
          _
        // Predicated region
        $region21: #{tpu_custom_call.1} parent=11 // pred_check
          %p228 = pneg %p109
        $region22: #{tpu_custom_call.1} parent=11 // pred_check_branch
          %230 = sbr.rel (%p228) target = $region24
        $region23: #{tpu_custom_call.1} parent=11 // pred_region
          %232 = vsyncadd [#allocation6], 0
          %s233 = sshll.u32 %s3, 4
          %s234 = int_to_ptr.hbm [resolvable:$true] %s233
          %s235 = sshll.u32 [#allocation7], 4
          %s236 = int_to_ptr.vmem [resolvable:$true] %s235
          %241 = dma.hbm_to_vmem [thread:$0]  %s234, 1024, %s236, [#allocation6], 64, 64, 4
        $region24: #{tpu_custom_call.1} parent=11 // pred_fallthru
          _
        // Predicated region
        $region25: #{tpu_custom_call.1} parent=11 // pred_check
          %p242 = pneg %p130
        $region26: #{tpu_custom_call.1} parent=11 // pred_check_branch
          %244 = sbr.rel (%p242) target = $region28
        $region27: #{tpu_custom_call.1} parent=11 // pred_region
          _
        $region28: #{tpu_custom_call.1} parent=11 // pred_fallthru
          _
        // Predicated region
        $region29: #{tpu_custom_call.1} parent=11 // pred_check
          %p245 = pneg %p151
        $region30: #{tpu_custom_call.1} parent=11 // pred_check_branch
          %247 = sbr.rel (%p245) target = $region32
        $region31: #{tpu_custom_call.1} parent=11 // pred_region
          _
        $region32: #{tpu_custom_call.1} parent=11 // pred_fallthru
          _
        // Predicated region
        $region33: #{tpu_custom_call.1} parent=11 // pred_check
          %p248 = pneg %p172
        $region34: #{tpu_custom_call.1} parent=11 // pred_check_branch
          %250 = sbr.rel (%p248) target = $region36
        $region35: #{tpu_custom_call.1} parent=11 // pred_region
          _
        $region36: #{tpu_custom_call.1} parent=11 // pred_fallthru
          _
      $region12: #{tpu_custom_call.1} parent=5 // pred_fallthru
        _
      %p251 = scmp.lt.s32.totalorder %s20, 2
      // Predicated region
      $region37: #{tpu_custom_call.1} parent=5 // pred_check
        %p252 = pneg %p251
      $region38: #{tpu_custom_call.1} parent=5 // pred_check_branch
        %254 = sbr.rel (%p252) target = $region40
      $region39: #{tpu_custom_call.1} parent=5 // pred_region
        // Predicated region
        $region41: #{tpu_custom_call.1} parent=39 // pred_check
          %p255 = pneg %p40
        $region42: #{tpu_custom_call.1} parent=39 // pred_check_branch
          %257 = sbr.rel (%p255) target = $region44
        $region43: #{tpu_custom_call.1} parent=39 // pred_region
          %s258 = sand.u32 %s30, 1
          %s259 = scalar_lea.sflag [#allocation3], %s258
          %s260 = sand.u32 %s30, 1
          %s261 = smul.addr %s260, 8
          %s262 = scalar_lea.vmem [#allocation2], %s261
          %264 = vsyncadd %s259, 0
          %s265 = smul.addr %s20, 8
          %s266 = scalar_lea.hbm %s0, %s265
          %s268 = sshll.u32 %s266, 4
          %s269 = int_to_ptr.hbm [resolvable:$true] %s268
          %s270 = sshll.u32 %s262, 4
          %s271 = int_to_ptr.vmem [resolvable:$true] %s270
          %273 = dma.hbm_to_vmem [thread:$0]  %s269, 128, %s271, %s259
        $region44: #{tpu_custom_call.1} parent=39 // pred_fallthru
          _
      $region40: #{tpu_custom_call.1} parent=5 // pred_fallthru
        _
      %p274 = scmp.le.s32.totalorder 1, %s20
      %p275 = scmp.lt.s32.totalorder %s20, 3
      %p276 = pnand %p274, %p275
      %p277 = pneg %p276
      // Predicated region
      $region45: #{tpu_custom_call.1} parent=5 // pred_check
        _
      $region46: #{tpu_custom_call.1} parent=5 // pred_check_branch
        %279 = sbr.rel (%p276) target = $region48
      $region47: #{tpu_custom_call.1} parent=5 // pred_region
        %s280 = ssub.s32 %s20, 1
        %s281 = sand.u32 %s33, 1
        %s282 = scalar_lea.sflag [#allocation3], %s281
        %s283 = sand.u32 %s33, 1
        %s284 = smul.addr %s283, 8
        %s285 = scalar_lea.vmem [#allocation2], %s284
        // Predicated region
        $region49: #{tpu_custom_call.1} parent=47 // pred_check
          %p286 = pneg %p46
        $region50: #{tpu_custom_call.1} parent=47 // pred_check_branch
          %288 = sbr.rel (%p286) target = $region52
        $region51: #{tpu_custom_call.1} parent=47 // pred_region
          %290 = dma.done %s282, 128
        $region52: #{tpu_custom_call.1} parent=47 // pred_fallthru
          _
        // Predicated region
        $region53: #{tpu_custom_call.1} parent=47 // pred_check
          %p291 = pneg %p67
        $region54: #{tpu_custom_call.1} parent=47 // pred_check_branch
          %293 = sbr.rel (%p291) target = $region56
        $region55: #{tpu_custom_call.1} parent=47 // pred_region
          %295 = dma.done [#allocation6], 16
        $region56: #{tpu_custom_call.1} parent=47 // pred_fallthru
          _
        // Predicated region
        $region57: #{tpu_custom_call.1} parent=47 // pred_check
          %p296 = pneg %p109
        $region58: #{tpu_custom_call.1} parent=47 // pred_check_branch
          %298 = sbr.rel (%p296) target = $region60
        $region59: #{tpu_custom_call.1} parent=47 // pred_region
          %300 = dma.done [#allocation6], 1024
        $region60: #{tpu_custom_call.1} parent=47 // pred_fallthru
          _
        %s301 = sand.u32 %s33, 1
        %s302 = scalar_lea.sflag [#allocation3], %s301
        %s303 = sand.u32 %s33, 1
        %s304 = smul.addr %s303, 8
        %s305 = scalar_lea.vmem [#allocation2], %s304
        %p306 = pneg %p46
        %p307 = pneg %p43
        %p308 = pneg %p67
        %p309 = pneg %p64
        %p310 = pneg %p88
        %p311 = pneg %p85
        %p312 = pneg %p109
        %p313 = pneg %p106
        %p314 = pneg %p130
        %p315 = pneg %p127
        %p316 = pneg %p151
        %p317 = pneg %p148
        %p318 = pneg %p172
        %p319 = pneg %p169
        %p320 = pneg %p198
        %p321 = pneg %p195
        %s322 = sand.u32 %s185, 1
        %s323 = scalar_lea.sflag [#allocation4], %s322
        %s324 = sand.u32 %s185, 1
        %s325 = smul.addr %s324, 8
        %s326 = scalar_lea.vmem [#allocation8], %s325
        %v327 = vlaneseq
        %v328 = vand.u32 %v327, 127
        %vm329 = vcmp.lt.s32.totalorder %v328, 32
        %v330 = vsel %vm329, 1, 0
        %v331 = vcvt.s32.f32 %v330
        %v332 = vld [vmem:[%s285] sm:$0xff]
        %v333 = vld [vmem:[#allocation5] sm:$0x1]
        %v334 = vld [vmem:[%s2] sm:$0x1]
        %335 = vadd.xlane.f32.xlu0 %v332
        %v336 = vpop.xlane.xlu0 %335
        %v337 = vmul.f32 %v336, 0.03125
        %v338 = vsub.f32 %v332, %v337
        %v339 = vmul.f32 %v338, %v331
        %v340 = vmul.f32 %v339, %v339
        %341 = vadd.xlane.f32.xlu0 %v340
        %v342 = vpop.xlane.xlu0 %341
        %v343 = vmul.f32 %v342, 0.03125
        %v344 = vadd.f32 %v343, 1e-05
        %v345 = vrsqrt.pop %v344
        %v346 = vmul.f32 %v345, %v344
        %v347 = vmul.f32 %v346, %v345
        %v348 = vmul.f32 0.5, %v347
        %v349 = vsub.f32 1.5, %v348
        %v350 = vmul.f32 %v345, %v349
        %vm351 = vweird.f32 %v344
        %vm352 = vweird.f32 %v345
        %vm353 = vmor %vm351, %vm352
        %v354 = vsel %vm353, %v345, %v350
        %v355 = vmul.f32 %v339, %v354
        %v357 = vperm.slane %v333, 0
        %v359 = vmul.f32 %v355, %v357
        %v361 = vperm.slane %v334, 0
        %v363 = vadd.f32 %v359, %v361
        %v364 = vpack.c.bf16 %v363, %v363
        %v365 = vld [vmem:[#allocation7] sm:$0xf]
        %v366 = vld [vmem:[#allocation7 + $0x4] sm:$0xf]
        %v367 = vld [vmem:[#allocation7 + $0x8] sm:$0xf]
        %v368 = vld [vmem:[#allocation7 + $0xc] sm:$0xf]
        %v369 = vld [vmem:[#allocation7 + $0x10] sm:$0xf]
        %v370 = vld [vmem:[#allocation7 + $0x14] sm:$0xf]
        %v371 = vld [vmem:[#allocation7 + $0x18] sm:$0xf]
        %v372 = vld [vmem:[#allocation7 + $0x1c] sm:$0xf]
        %v373 = vld [vmem:[#allocation7 + $0x20] sm:$0xf]
        %v374 = vld [vmem:[#allocation7 + $0x24] sm:$0xf]
        %v375 = vld [vmem:[#allocation7 + $0x28] sm:$0xf]
        %v376 = vld [vmem:[#allocation7 + $0x2c] sm:$0xf]
        %v377 = vld [vmem:[#allocation7 + $0x30] sm:$0xf]
        %v378 = vld [vmem:[#allocation7 + $0x34] sm:$0xf]
        %v379 = vld [vmem:[#allocation7 + $0x38] sm:$0xf]
        %v380 = vld [vmem:[#allocation7 + $0x3c] sm:$0xf]
        %v381 = vld [vmem:[%s4] sm:$0x1]
        %v383 = vperm.slane %v381, 0
        %v401 = vunpack.c.l.b16 %v365
        %v402 = vunpack.c.l.b16 %v366
        %v403 = vunpack.c.l.b16 %v367
        %v404 = vunpack.c.l.b16 %v368
        %v405 = vunpack.c.l.b16 %v369
        %v406 = vunpack.c.l.b16 %v370
        %v407 = vunpack.c.l.b16 %v371
        %v408 = vunpack.c.l.b16 %v372
        %v409 = vunpack.c.l.b16 %v373
        %v410 = vunpack.c.l.b16 %v374
        %v411 = vunpack.c.l.b16 %v375
        %v412 = vunpack.c.l.b16 %v376
        %v413 = vunpack.c.l.b16 %v377
        %v414 = vunpack.c.l.b16 %v378
        %v415 = vunpack.c.l.b16 %v379
        %v416 = vunpack.c.l.b16 %v380
        %v417 = vpack.c.b16 %v402, %v401
        %v418 = vpack.c.b16 %v404, %v403
        %v419 = vpack.c.b16 %v406, %v405
        %v420 = vpack.c.b16 %v408, %v407
        %v421 = vpack.c.b16 %v410, %v409
        %v422 = vpack.c.b16 %v412, %v411
        %v423 = vpack.c.b16 %v414, %v413
        %v424 = vpack.c.b16 %v416, %v415
        %433 = vmatpush.bf16.msra.mxu0 %v424
        %434 = vmatpush.bf16.msra.mxu0 %v423
        %435 = vmatpush.bf16.msra.mxu0 %v422
        %436 = vmatpush.bf16.msra.mxu0 %v421
        %437 = vmatpush.bf16.msra.mxu0 %v420
        %438 = vmatpush.bf16.msra.mxu0 %v419
        %439 = vmatpush.bf16.msra.mxu0 %v418
        %440 = vmatpush.bf16.msra.mxu0 %v417
        %441 = vmatmul.bf16.gmra.mxu0 %v364
        %v442 = vpop.f32.mrf.mxu0
        %v443 = vadd.f32 %v383, %v442
        %v444 = vpop.f32.mrf.mxu0
        %445 = vdwg.mxu0
        %v446 = vld [vmem:[%s5] sm:$0x1]
        %v447 = vld [vmem:[%s6] sm:$0x1]
        %448 = vadd.xlane.f32.xlu0 %v443
        %v449 = vpop.xlane.xlu0 %448
        %v450 = vmul.f32 %v449, 0.03125
        %v451 = vsub.f32 %v443, %v450
        %v452 = vmul.f32 %v451, %v331
        %v453 = vmul.f32 %v452, %v452
        %454 = vadd.xlane.f32.xlu0 %v453
        %v455 = vpop.xlane.xlu0 %454
        %v456 = vmul.f32 %v455, 0.03125
        %v457 = vadd.f32 %v456, 1e-05
        %v458 = vrsqrt.pop %v457
        %v459 = vmul.f32 %v458, %v457
        %v460 = vmul.f32 %v459, %v458
        %v461 = vmul.f32 0.5, %v460
        %v462 = vsub.f32 1.5, %v461
        %v463 = vmul.f32 %v458, %v462
        %vm464 = vweird.f32 %v457
        %vm465 = vweird.f32 %v458
        %vm466 = vmor %vm464, %vm465
        %v467 = vsel %vm466, %v458, %v463
        %v468 = vmul.f32 %v452, %v467
        %v470 = vperm.slane %v446, 0
        %v472 = vmul.f32 %v468, %v470
        %v474 = vperm.slane %v447, 0
        %v476 = vadd.f32 %v472, %v474
        %477 = vst [vmem:[%s326] sm:$0xff] %v476
        %s478 = sand.u32 %s185, 1
        %s479 = scalar_lea.sflag [#allocation4], %s478
        %s480 = sand.u32 %s185, 1
        %s481 = smul.addr %s480, 8
        %s482 = scalar_lea.vmem [#allocation8], %s481
        // Predicated region
        $region61: #{tpu_custom_call.1} parent=47 // pred_check
          %p483 = pneg %p195
        $region62: #{tpu_custom_call.1} parent=47 // pred_check_branch
          %485 = sbr.rel (%p483) target = $region64
        $region63: #{tpu_custom_call.1} parent=47 // pred_region
          %487 = vsyncadd %s479, 0
          %s488 = smul.addr %s25, 8
          %s489 = scalar_lea.hbm %s7, %s488
          %s491 = sshll.u32 %s482, 4
          %s492 = int_to_ptr.vmem [resolvable:$true] %s491
          %s493 = sshll.u32 %s489, 4
          %s494 = int_to_ptr.hbm [resolvable:$true] %s493
          %496 = dma.vmem_to_hbm [thread:$0]  %s492, 128, %s494, %s479
        $region64: #{tpu_custom_call.1} parent=47 // pred_fallthru
          _
      $region48: #{tpu_custom_call.1} parent=5 // pred_fallthru
        _
      %p497 = scmp.le.s32.totalorder 2, %s20
      // Predicated region
      $region65: #{tpu_custom_call.1} parent=5 // pred_check
        %p498 = pneg %p497
      $region66: #{tpu_custom_call.1} parent=5 // pred_check_branch
        %500 = sbr.rel (%p498) target = $region68
      $region67: #{tpu_custom_call.1} parent=5 // pred_region
        %s501 = ssub.s32 %s20, 2
        // Predicated region
        $region69: #{tpu_custom_call.1} parent=67 // pred_check
          %p502 = pneg %p201
        $region70: #{tpu_custom_call.1} parent=67 // pred_check_branch
          %504 = sbr.rel (%p502) target = $region72
        $region71: #{tpu_custom_call.1} parent=67 // pred_region
          %s505 = sand.u32 %s186, 1
          %s506 = scalar_lea.sflag [#allocation4], %s505
          %s507 = sand.u32 %s186, 1
          %s508 = smul.addr %s507, 8
          %s509 = scalar_lea.vmem [#allocation8], %s508
          %511 = dma.done %s506, 128
        $region72: #{tpu_custom_call.1} parent=67 // pred_fallthru
          _
      $region68: #{tpu_custom_call.1} parent=5 // pred_fallthru
        _
    $region6: #{tpu_custom_call.1} parent=1 // loop_footer
      %s24 = sadd.s32 1, %s20
    $region7: #{tpu_custom_call.1} parent=1 // loop_footer_branch
      %19 = sbr.rel target = $region3
    $region8: #{tpu_custom_call.1} parent=1 // loop_exit
      _
    %512 = vsyncpa [#allocation3], 1
    %s513 = scalar_lea.sflag [#allocation3], 1
    %514 = vsyncpa %s513, 1
    %515 = vsyncpa [#allocation6], 1
    %516 = vsyncpa [#allocation4], 1
    %s517 = scalar_lea.sflag [#allocation4], 1
    %518 = vsyncpa %s517, 1

</llo_original>
